<compile_context>
chip_gen: v5e
topology: v5e:2x2
jax: 0.10.0
libtpu: 0.0.40
codegen_flags: <defaults>
</compile_context>

<pallas_src>
import jax
import jax.numpy as jnp
from jax.experimental import pallas as pl
from jax.experimental.pallas import tpu as pltpu

EPS = 1e-5


def _bn_coeffs(v, gamma, beta):
    """Training-mode BatchNorm1d as coefficients for a single FMA.

    Returns (a, c) such that bn(v) == v * a + c, with
      a = gamma * rsqrt(var + eps),  c = beta - mu * a,
    using single-pass biased batch variance var = E[v^2] - mu^2 (clamped at 0).
    Statistics are accumulated in f32.
    """
    mu = jnp.mean(v, axis=0, keepdims=True)
    msq = jnp.mean(v * v, axis=0, keepdims=True)
    var = jnp.maximum(msq - mu * mu, 0.0)
    a = jax.lax.rsqrt(var + EPS) * gamma
    c = beta - mu * a
    return a, c


def _make_kernel(act_dtype):
    """Build the kernel with a static element-wise activation dtype."""

    def kernel(x_ref,
               g0_ref, bt0_ref,
               w1_ref, b1_ref,      # w1: (9,1000) bf16, b1: (1,1000) f32
               g1_ref, bt1_ref,
               w2_ref, b2_ref,      # w2: (1000,100) bf16, b2: (1,100) f32
               g2_ref, bt2_ref,
               w3r_ref, b3_ref,     # w3_row: (1,100) f32, b3: (1,1) f32
               o_ref):
        x = x_ref[...].astype(jnp.float32)

        # bn0 (N, 9): single FMA, then cast for the MXU (tiny tensor).
        a0, c0 = _bn_coeffs(x, g0_ref[...], bt0_ref[...])
        xb = (x * a0 + c0).astype(jnp.bfloat16)

        # lin1 + relu: bf16 operands (weights pre-cast outside the kernel),
        # f32 accumulation on the MXU.
        h = jnp.dot(xb, w1_ref[...], preferred_element_type=jnp.float32)
        h = jnp.maximum(h + b1_ref[...], 0.0)                 # (N, 1000) f32

        # bn1: stats in f32, normalization applied as one FMA in act_dtype
        # (bf16 on v6e/v7x, f32 on v5e).
        a1, c1 = _bn_coeffs(h, g1_ref[...], bt1_ref[...])
        hn = (h.astype(act_dtype) * a1.astype(act_dtype)
              + c1.astype(act_dtype))                         # (N, 1000)

        # softmax(dim=1) with deferred normalization: unnormalized e and the
        # row-sum r; the 1/r division is pushed past lin2 (lin2 is affine and
        # relu(y/r) = relu(y)/r for r > 0).  Reductions accumulate in f32.
        m = jnp.max(hn.astype(jnp.float32), axis=1, keepdims=True)
        e = jnp.exp(hn - m.astype(act_dtype))                 # act_dtype, (0,1]
        r = jnp.sum(e.astype(jnp.float32), axis=1, keepdims=True)   # (N,1) f32

        # lin2 on unnormalized e (bf16 MXU, f32 acc); deferred softmax scale
        # applied in the cheap (N,100) epilogue together with bias + relu.
        y = jnp.dot(e.astype(jnp.bfloat16), w2_ref[...],
                    preferred_element_type=jnp.float32)       # (N, 100) f32
        h2 = (jnp.maximum(y + r * b2_ref[...], 0.0)
              * pl.reciprocal(r, approx=True))                # (N, 100) f32

        # bn2 folded into lin3:
        #   bn2(h2) = h2*a2 + c2
        #   lin3(bn2(h2)) = sum_j h2_j*(a2_j*w3_j) + sum_j c2_j*w3_j + b3
        # i.e. a VPU multiply + lane reduction; no MXU round-trip for a 1-wide
        # output and no separate BN pass over the (N,100) activation.
        a2, c2 = _bn_coeffs(h2, g2_ref[...], bt2_ref[...])
        w3_row = w3r_ref[...]                                 # (1, 100)
        w_eff = a2 * w3_row                                   # (1, 100)
        b_eff = jnp.sum(c2 * w3_row, axis=1, keepdims=True) + b3_ref[...]
        z = jnp.sum(h2 * w_eff, axis=1, keepdims=True) + b_eff  # (N, 1)

        # sigmoid via EUP tanh: sigmoid(z) = 0.5*tanh(0.5*z) + 0.5
        o_ref[...] = 0.5 * jnp.tanh(0.5 * z) + 0.5

    return kernel


def _chip_config():
    """Static per-chip choices: activation dtype, VMEM limit, monolithic N cap."""
    kind = ""
    try:
        kind = jax.devices()[0].device_kind.lower()
    except Exception:
        pass
    is_v7 = ("v7" in kind) or ("7x" in kind)
    # bf16 VALU/EUP exist on v6e/v7x; v5e (and unknown chips) keep f32
    # element-wise math (bf16 there would be emulated via converts).
    bf16_act = ("v6" in kind) or is_v7

    vmem_cap = None
    try:
        vmem_cap = int(pltpu.get_tpu_info().vmem_capacity_bytes)
    except Exception:
        vmem_cap = None
    if vmem_cap is None:
        vmem_cap = (64 if is_v7 else 128) * 1024 * 1024
    vmem_limit = int(min(48 * 1024 * 1024, (vmem_cap * 5) // 8))
    max_n = 2048 if vmem_limit >= 40 * 1024 * 1024 else 1024
    return bf16_act, vmem_limit, max_n


def more_cell_forward(x, params):
    """x: (N, 9) float32 -> (N,) float32."""
    n = x.shape[0]
    bf16_act, vmem_limit, max_n = _chip_config()
    assert n <= max_n, (
        "monolithic kernel expects N <= %d on this chip (VMEM-resident "
        "activations); use a batch-tiled variant for larger N" % max_n)

    # Weights pre-cast to bf16 OUTSIDE the kernel (no-op if already bf16).
    w1 = params["w1"].astype(jnp.bfloat16)
    w2 = params["w2"].astype(jnp.bfloat16)

    args = (
        x,
        params["g0"], params["bt0"],
        w1, params["b1"],
        params["g1"], params["bt1"],
        w2, params["b2"],
        params["g2"], params["bt2"],
        params["w3_row"], params["b3"],
    )

    # Advisory cost estimate for XLA's scheduler.
    flops = 2 * n * (9 * 1000 + 1000 * 100 + 100)
    transcendentals = n * (1000 + 2)            # exp row + recip + tanh
    bytes_accessed = (2 * (9 * 1000 + 1000 * 100)               # bf16 weights
                      + 4 * (1000 + 100 + 1 + 2 * (9 + 1000 + 100))
                      + 4 * (n * 9 + n))

    act_dtype = jnp.bfloat16 if bf16_act else jnp.float32
    vmem_spec = pl.BlockSpec(memory_space=pltpu.MemorySpace.VMEM)
    out = pl.pallas_call(
        _make_kernel(act_dtype),
        out_shape=jax.ShapeDtypeStruct((n, 1), jnp.float32),
        in_specs=[vmem_spec] * len(args),
        out_specs=vmem_spec,
        compiler_params=pltpu.CompilerParams(vmem_limit_bytes=vmem_limit),
        cost_estimate=pl.CostEstimate(
            flops=flops,
            transcendentals=transcendentals,
            bytes_accessed=bytes_accessed),
    )(*args)
    # squeeze(-1) done in the wrapper (glue)
    return out.reshape(n)


def init_params(key):
    """Deterministic parameter init matching MoreCellModel.__init__ shapes."""
    ks = jax.random.split(key, 6)

    def linear(kw, kb, fan_in, fan_out):
        bound = 1.0 / jnp.sqrt(fan_in)
        w = jax.random.uniform(kw, (fan_in, fan_out), jnp.float32, -bound, bound)
        b = jax.random.uniform(kb, (1, fan_out), jnp.float32, -bound, bound)
        return w, b

    w1, b1 = linear(ks[0], ks[1], 9, 1000)
    w2, b2 = linear(ks[2], ks[3], 1000, 100)   # nn.Linear(1000, 100, 3): bias=3 truthy -> has bias
    w3, b3 = linear(ks[4], ks[5], 100, 1)
    w3_row = w3.reshape(1, 100)                # lin3 kept as a (1,100) row for the VPU reduce

    return dict(
        g0=jnp.ones((1, 9), jnp.float32),    bt0=jnp.zeros((1, 9), jnp.float32),
        g1=jnp.ones((1, 1000), jnp.float32), bt1=jnp.zeros((1, 1000), jnp.float32),
        g2=jnp.ones((1, 100), jnp.float32),  bt2=jnp.zeros((1, 100), jnp.float32),
        # MXU weights stored pre-cast to bf16 (cast happens outside the kernel).
        w1=w1.astype(jnp.bfloat16), b1=b1,
        w2=w2.astype(jnp.bfloat16), b2=b2,
        w3_row=w3_row, b3=b3,
    )


if __name__ == "__main__":
    key = jax.random.PRNGKey(0)
    kx, kp = jax.random.split(key)

    N = 8
    x = jax.random.normal(kx, (N, 9), jnp.float32)
    params = init_params(kp)

    out = more_cell_forward(x, params)
    out = jax.block_until_ready(out)

    assert out.shape == (N,), out.shape
    assert bool(jnp.all(jnp.isfinite(out)))
    assert bool(jnp.all((out >= 0.0) & (out <= 1.0)))
    print("KERNEL_OK")
</pallas_src>

<mosaic_0001>
module attributes {stable_mosaic.version = 11 : i64} {
  func.func @kernel(%arg0: memref<8x9xf32, #tpu.memory_space<vmem>>, %arg1: memref<1x9xf32, #tpu.memory_space<vmem>>, %arg2: memref<1x9xf32, #tpu.memory_space<vmem>>, %arg3: memref<9x1000xbf16, #tpu.memory_space<vmem>>, %arg4: memref<1x1000xf32, #tpu.memory_space<vmem>>, %arg5: memref<1x1000xf32, #tpu.memory_space<vmem>>, %arg6: memref<1x1000xf32, #tpu.memory_space<vmem>>, %arg7: memref<1000x100xbf16, #tpu.memory_space<vmem>>, %arg8: memref<1x100xf32, #tpu.memory_space<vmem>>, %arg9: memref<1x100xf32, #tpu.memory_space<vmem>>, %arg10: memref<1x100xf32, #tpu.memory_space<vmem>>, %arg11: memref<1x100xf32, #tpu.memory_space<vmem>>, %arg12: memref<1x1xf32, #tpu.memory_space<vmem>>, %arg13: memref<8x1xf32, #tpu.memory_space<vmem>>) attributes {dimension_semantics = [], scalar_prefetch = 0 : i64, scratch_operands = 0 : i64, tpu.core_type = #tpu.core_type<tc>} {
    %c0 = arith.constant 0 : index
    %c0_0 = arith.constant 0 : index
    %0 = vector.load %arg0[%c0, %c0_0] : memref<8x9xf32, #tpu.memory_space<vmem>>, vector<8x9xf32>
    %c0_1 = arith.constant 0 : index
    %c0_2 = arith.constant 0 : index
    %1 = vector.load %arg1[%c0_1, %c0_2] : memref<1x9xf32, #tpu.memory_space<vmem>>, vector<1x9xf32>
    %c0_3 = arith.constant 0 : index
    %c0_4 = arith.constant 0 : index
    %2 = vector.load %arg2[%c0_3, %c0_4] : memref<1x9xf32, #tpu.memory_space<vmem>>, vector<1x9xf32>
    %cst = arith.constant dense<0.000000e+00> : vector<9xf32>
    %3 = vector.multi_reduction <add>, %0, %cst [0] : vector<8x9xf32> to vector<9xf32>
    %4 = vector.shape_cast %3 : vector<9xf32> to vector<1x9xf32>
    %cst_5 = arith.constant 8.000000e+00 : f32
    %5 = vector.broadcast %cst_5 : f32 to vector<1x9xf32>
    %6 = arith.divf %4, %5 : vector<1x9xf32>
    %7 = arith.mulf %0, %0 : vector<8x9xf32>
    %cst_6 = arith.constant dense<0.000000e+00> : vector<9xf32>
    %8 = vector.multi_reduction <add>, %7, %cst_6 [0] : vector<8x9xf32> to vector<9xf32>
    %9 = vector.shape_cast %8 : vector<9xf32> to vector<1x9xf32>
    %cst_7 = arith.constant 8.000000e+00 : f32
    %10 = vector.broadcast %cst_7 : f32 to vector<1x9xf32>
    %11 = arith.divf %9, %10 : vector<1x9xf32>
    %12 = arith.mulf %6, %6 : vector<1x9xf32>
    %13 = arith.subf %11, %12 : vector<1x9xf32>
    %cst_8 = arith.constant 0.000000e+00 : f32
    %14 = vector.broadcast %cst_8 : f32 to vector<1x9xf32>
    %15 = arith.maximumf %13, %14 : vector<1x9xf32>
    %cst_9 = arith.constant 9.99999974E-6 : f32
    %16 = vector.broadcast %cst_9 : f32 to vector<1x9xf32>
    %17 = arith.addf %15, %16 : vector<1x9xf32>
    %18 = math.rsqrt %17 : vector<1x9xf32>
    %19 = arith.mulf %18, %1 : vector<1x9xf32>
    %20 = arith.mulf %6, %19 : vector<1x9xf32>
    %21 = arith.subf %2, %20 : vector<1x9xf32>
    %22 = vector.broadcast %19 : vector<1x9xf32> to vector<8x9xf32>
    %23 = arith.mulf %0, %22 : vector<8x9xf32>
    %24 = vector.broadcast %21 : vector<1x9xf32> to vector<8x9xf32>
    %25 = arith.addf %23, %24 : vector<8x9xf32>
    %26 = arith.truncf %25 : vector<8x9xf32> to vector<8x9xbf16>
    %c0_10 = arith.constant 0 : index
    %c0_11 = arith.constant 0 : index
    %27 = vector.load %arg3[%c0_10, %c0_11] : memref<9x1000xbf16, #tpu.memory_space<vmem>>, vector<9x1000xbf16>
    %cst_12 = arith.constant dense<0.000000e+00> : vector<8x1000xf32>
    %28 = tpu.matmul %26, %27, %cst_12 {dimension_numbers = #tpu.dot_dimension_numbers<[1], [0], [0], [1], [0, 0, 1, 1], [], []>} : vector<8x9xbf16>, vector<9x1000xbf16>, vector<8x1000xf32> -> vector<8x1000xf32>
    %c0_13 = arith.constant 0 : index
    %c0_14 = arith.constant 0 : index
    %29 = vector.load %arg4[%c0_13, %c0_14] : memref<1x1000xf32, #tpu.memory_space<vmem>>, vector<1x1000xf32>
    %30 = vector.broadcast %29 : vector<1x1000xf32> to vector<8x1000xf32>
    %31 = arith.addf %28, %30 : vector<8x1000xf32>
    %cst_15 = arith.constant 0.000000e+00 : f32
    %32 = vector.broadcast %cst_15 : f32 to vector<8x1000xf32>
    %33 = arith.maximumf %31, %32 : vector<8x1000xf32>
    %c0_16 = arith.constant 0 : index
    %c0_17 = arith.constant 0 : index
    %34 = vector.load %arg5[%c0_16, %c0_17] : memref<1x1000xf32, #tpu.memory_space<vmem>>, vector<1x1000xf32>
    %c0_18 = arith.constant 0 : index
    %c0_19 = arith.constant 0 : index
    %35 = vector.load %arg6[%c0_18, %c0_19] : memref<1x1000xf32, #tpu.memory_space<vmem>>, vector<1x1000xf32>
    %cst_20 = arith.constant dense<0.000000e+00> : vector<1000xf32>
    %36 = vector.multi_reduction <add>, %33, %cst_20 [0] : vector<8x1000xf32> to vector<1000xf32>
    %37 = vector.shape_cast %36 : vector<1000xf32> to vector<1x1000xf32>
    %cst_21 = arith.constant 8.000000e+00 : f32
    %38 = vector.broadcast %cst_21 : f32 to vector<1x1000xf32>
    %39 = arith.divf %37, %38 : vector<1x1000xf32>
    %40 = arith.mulf %33, %33 : vector<8x1000xf32>
    %cst_22 = arith.constant dense<0.000000e+00> : vector<1000xf32>
    %41 = vector.multi_reduction <add>, %40, %cst_22 [0] : vector<8x1000xf32> to vector<1000xf32>
    %42 = vector.shape_cast %41 : vector<1000xf32> to vector<1x1000xf32>
    %cst_23 = arith.constant 8.000000e+00 : f32
    %43 = vector.broadcast %cst_23 : f32 to vector<1x1000xf32>
    %44 = arith.divf %42, %43 : vector<1x1000xf32>
    %45 = arith.mulf %39, %39 : vector<1x1000xf32>
    %46 = arith.subf %44, %45 : vector<1x1000xf32>
    %cst_24 = arith.constant 0.000000e+00 : f32
    %47 = vector.broadcast %cst_24 : f32 to vector<1x1000xf32>
    %48 = arith.maximumf %46, %47 : vector<1x1000xf32>
    %cst_25 = arith.constant 9.99999974E-6 : f32
    %49 = vector.broadcast %cst_25 : f32 to vector<1x1000xf32>
    %50 = arith.addf %48, %49 : vector<1x1000xf32>
    %51 = math.rsqrt %50 : vector<1x1000xf32>
    %52 = arith.mulf %51, %34 : vector<1x1000xf32>
    %53 = arith.mulf %39, %52 : vector<1x1000xf32>
    %54 = arith.subf %35, %53 : vector<1x1000xf32>
    %55 = vector.broadcast %52 : vector<1x1000xf32> to vector<8x1000xf32>
    %56 = arith.mulf %33, %55 : vector<8x1000xf32>
    %57 = vector.broadcast %54 : vector<1x1000xf32> to vector<8x1000xf32>
    %58 = arith.addf %56, %57 : vector<8x1000xf32>
    %cst_26 = arith.constant dense<0xFF800000> : vector<8xf32>
    %59 = vector.multi_reduction <maximumf>, %58, %cst_26 [1] : vector<8x1000xf32> to vector<8xf32>
    %60 = vector.shape_cast %59 : vector<8xf32> to vector<8x1xf32>
    %61 = vector.broadcast %60 : vector<8x1xf32> to vector<8x1000xf32>
    %62 = arith.subf %58, %61 : vector<8x1000xf32>
    %63 = math.exp %62 : vector<8x1000xf32>
    %cst_27 = arith.constant dense<0.000000e+00> : vector<8xf32>
    %64 = vector.multi_reduction <add>, %63, %cst_27 [1] : vector<8x1000xf32> to vector<8xf32>
    %65 = vector.shape_cast %64 : vector<8xf32> to vector<8x1xf32>
    %66 = arith.truncf %63 : vector<8x1000xf32> to vector<8x1000xbf16>
    %c0_28 = arith.constant 0 : index
    %c0_29 = arith.constant 0 : index
    %67 = vector.load %arg7[%c0_28, %c0_29] : memref<1000x100xbf16, #tpu.memory_space<vmem>>, vector<1000x100xbf16>
    %cst_30 = arith.constant dense<0.000000e+00> : vector<8x100xf32>
    %68 = tpu.matmul %66, %67, %cst_30 {dimension_numbers = #tpu.dot_dimension_numbers<[1], [0], [0], [1], [0, 0, 1, 1], [], []>} : vector<8x1000xbf16>, vector<1000x100xbf16>, vector<8x100xf32> -> vector<8x100xf32>
    %c0_31 = arith.constant 0 : index
    %c0_32 = arith.constant 0 : index
    %69 = vector.load %arg8[%c0_31, %c0_32] : memref<1x100xf32, #tpu.memory_space<vmem>>, vector<1x100xf32>
    %70 = vector.broadcast %65 : vector<8x1xf32> to vector<8x100xf32>
    %71 = vector.broadcast %69 : vector<1x100xf32> to vector<8x100xf32>
    %72 = arith.mulf %70, %71 : vector<8x100xf32>
    %73 = arith.addf %68, %72 : vector<8x100xf32>
    %cst_33 = arith.constant 0.000000e+00 : f32
    %74 = vector.broadcast %cst_33 : f32 to vector<8x100xf32>
    %75 = arith.maximumf %73, %74 : vector<8x100xf32>
    %76 = tpu.reciprocal %65 {approx = true} : vector<8x1xf32> -> vector<8x1xf32>
    %77 = vector.broadcast %76 : vector<8x1xf32> to vector<8x100xf32>
    %78 = arith.mulf %75, %77 : vector<8x100xf32>
    %c0_34 = arith.constant 0 : index
    %c0_35 = arith.constant 0 : index
    %79 = vector.load %arg9[%c0_34, %c0_35] : memref<1x100xf32, #tpu.memory_space<vmem>>, vector<1x100xf32>
    %c0_36 = arith.constant 0 : index
    %c0_37 = arith.constant 0 : index
    %80 = vector.load %arg10[%c0_36, %c0_37] : memref<1x100xf32, #tpu.memory_space<vmem>>, vector<1x100xf32>
    %cst_38 = arith.constant dense<0.000000e+00> : vector<100xf32>
    %81 = vector.multi_reduction <add>, %78, %cst_38 [0] : vector<8x100xf32> to vector<100xf32>
    %82 = vector.shape_cast %81 : vector<100xf32> to vector<1x100xf32>
    %cst_39 = arith.constant 8.000000e+00 : f32
    %83 = vector.broadcast %cst_39 : f32 to vector<1x100xf32>
    %84 = arith.divf %82, %83 : vector<1x100xf32>
    %85 = arith.mulf %78, %78 : vector<8x100xf32>
    %cst_40 = arith.constant dense<0.000000e+00> : vector<100xf32>
    %86 = vector.multi_reduction <add>, %85, %cst_40 [0] : vector<8x100xf32> to vector<100xf32>
    %87 = vector.shape_cast %86 : vector<100xf32> to vector<1x100xf32>
    %cst_41 = arith.constant 8.000000e+00 : f32
    %88 = vector.broadcast %cst_41 : f32 to vector<1x100xf32>
    %89 = arith.divf %87, %88 : vector<1x100xf32>
    %90 = arith.mulf %84, %84 : vector<1x100xf32>
    %91 = arith.subf %89, %90 : vector<1x100xf32>
    %cst_42 = arith.constant 0.000000e+00 : f32
    %92 = vector.broadcast %cst_42 : f32 to vector<1x100xf32>
    %93 = arith.maximumf %91, %92 : vector<1x100xf32>
    %cst_43 = arith.constant 9.99999974E-6 : f32
    %94 = vector.broadcast %cst_43 : f32 to vector<1x100xf32>
    %95 = arith.addf %93, %94 : vector<1x100xf32>
    %96 = math.rsqrt %95 : vector<1x100xf32>
    %97 = arith.mulf %96, %79 : vector<1x100xf32>
    %98 = arith.mulf %84, %97 : vector<1x100xf32>
    %99 = arith.subf %80, %98 : vector<1x100xf32>
    %c0_44 = arith.constant 0 : index
    %c0_45 = arith.constant 0 : index
    %100 = vector.load %arg11[%c0_44, %c0_45] : memref<1x100xf32, #tpu.memory_space<vmem>>, vector<1x100xf32>
    %101 = arith.mulf %97, %100 : vector<1x100xf32>
    %102 = arith.mulf %99, %100 : vector<1x100xf32>
    %cst_46 = arith.constant dense<0.000000e+00> : vector<1xf32>
    %103 = vector.multi_reduction <add>, %102, %cst_46 [1] : vector<1x100xf32> to vector<1xf32>
    %104 = vector.shape_cast %103 : vector<1xf32> to vector<1x1xf32>
    %c0_47 = arith.constant 0 : index
    %c0_48 = arith.constant 0 : index
    %105 = vector.load %arg12[%c0_47, %c0_48] : memref<1x1xf32, #tpu.memory_space<vmem>>, vector<1x1xf32>
    %106 = arith.addf %104, %105 : vector<1x1xf32>
    %107 = vector.broadcast %101 : vector<1x100xf32> to vector<8x100xf32>
    %108 = arith.mulf %78, %107 : vector<8x100xf32>
    %cst_49 = arith.constant dense<0.000000e+00> : vector<8xf32>
    %109 = vector.multi_reduction <add>, %108, %cst_49 [1] : vector<8x100xf32> to vector<8xf32>
    %110 = vector.shape_cast %109 : vector<8xf32> to vector<8x1xf32>
    %111 = vector.broadcast %106 : vector<1x1xf32> to vector<8x1xf32>
    %112 = arith.addf %110, %111 : vector<8x1xf32>
    %cst_50 = arith.constant 5.000000e-01 : f32
    %113 = vector.broadcast %cst_50 : f32 to vector<8x1xf32>
    %114 = arith.mulf %113, %112 : vector<8x1xf32>
    %115 = math.tanh %114 : vector<8x1xf32>
    %cst_51 = arith.constant 5.000000e-01 : f32
    %116 = vector.broadcast %cst_51 : f32 to vector<8x1xf32>
    %117 = arith.mulf %116, %115 : vector<8x1xf32>
    %cst_52 = arith.constant 5.000000e-01 : f32
    %118 = vector.broadcast %cst_52 : f32 to vector<8x1xf32>
    %119 = arith.addf %117, %118 : vector<8x1xf32>
    %c0_53 = arith.constant 0 : index
    %c0_54 = arith.constant 0 : index
    %120 = vector.load %arg13[%c0_53, %c0_54] : memref<8x1xf32, #tpu.memory_space<vmem>>, vector<8x1xf32>
    tpu.vector_store %arg13[%c0_53, %c0_54], %119 {strides = array<i32>} : memref<8x1xf32, #tpu.memory_space<vmem>>, vector<8x1xf32>,
    return
  }
}

</mosaic_0001>

<llo_original>
// kernel: tpu_custom_call.1
$region0: #{tpu_custom_call.1}
  #allocation0 [shape = 'u32[]', space=smem, size = 0x4, offset = 0x4, fixed_abs, tag = 'smem constant byte address 0x4 - core index']
  #allocation1 [shape = 'u32[72,128]{1,0:T(1,128)}', space=vmem, size = 0x9000, scoped, tag = 'internal scratch']
  #allocation2 [shape = 'f32[1,1]{1,0:T(1,128)S(1)}', space=vmem, size = 0x200, scoped, tag = 'scoped memory for tpu_custom_call.1']
  %s0 = inlined_call_operand.vmem [shape: f32[8,9], index: 0, kind: input, shape index: {}]
  %s1 = inlined_call_operand.vmem [shape: f32[1,9], index: 1, kind: input, shape index: {}]
  %s2 = inlined_call_operand.vmem [shape: f32[1,9], index: 2, kind: input, shape index: {}]
  %s3 = inlined_call_operand.vmem [shape: bf16[9,1000], index: 3, kind: input, shape index: {}]
  %s4 = inlined_call_operand.vmem [shape: f32[1,1000], index: 4, kind: input, shape index: {}]
  %s5 = inlined_call_operand.vmem [shape: f32[1,1000], index: 5, kind: input, shape index: {}]
  %s6 = inlined_call_operand.vmem [shape: f32[1,1000], index: 6, kind: input, shape index: {}]
  %s7 = inlined_call_operand.vmem [shape: bf16[1000,100], index: 7, kind: input, shape index: {}]
  %s8 = inlined_call_operand.vmem [shape: f32[1,100], index: 8, kind: input, shape index: {}]
  %s9 = inlined_call_operand.vmem [shape: f32[1,100], index: 9, kind: input, shape index: {}]
  %s10 = inlined_call_operand.vmem [shape: f32[1,100], index: 10, kind: input, shape index: {}]
  %s11 = inlined_call_operand.vmem [shape: f32[1,100], index: 11, kind: input, shape index: {}]
  %s12 = inlined_call_operand.<no memory space> [shape: f32[1,1], index: 12, kind: input, shape index: {}]
  %s13 = inlined_call_operand.vmem [shape: f32[8,1], index: 13, kind: output, shape index: {}]
  %s14 = sld [smem:[#allocation0]]
  $region62: #{tpu_custom_call.1} parent=0
    _
  %s16 = ssub.s32 1, %s14
  %s17 = scalar_select 0, %s16, %s14
  %v18 = vstv %s12
  %19 = vst [vmem:[#allocation2] sm:$0x1] %v18
  // Predicated region
  $region2: #{tpu_custom_call.1} parent=0 // pred_check
    _
  $region3: #{tpu_custom_call.1} parent=0 // pred_check_branch
    %21 = sbr.rel (0) target = $region5
  $region4: #{tpu_custom_call.1} parent=0 // pred_region
    _
  $region5: #{tpu_custom_call.1} parent=0 // pred_fallthru
    _
  // Predicated region
  $region6: #{tpu_custom_call.1} parent=0 // pred_check
    _
  $region7: #{tpu_custom_call.1} parent=0 // pred_check_branch
    %23 = sbr.rel (0) target = $region9
  $region8: #{tpu_custom_call.1} parent=0 // pred_region
    _
  $region9: #{tpu_custom_call.1} parent=0 // pred_fallthru
    _
  // Predicated region
  $region10: #{tpu_custom_call.1} parent=0 // pred_check
    _
  $region11: #{tpu_custom_call.1} parent=0 // pred_check_branch
    %25 = sbr.rel (0) target = $region13
  $region12: #{tpu_custom_call.1} parent=0 // pred_region
    _
  $region13: #{tpu_custom_call.1} parent=0 // pred_fallthru
    _
  // Predicated region
  $region14: #{tpu_custom_call.1} parent=0 // pred_check
    _
  $region15: #{tpu_custom_call.1} parent=0 // pred_check_branch
    %27 = sbr.rel (0) target = $region17
  $region16: #{tpu_custom_call.1} parent=0 // pred_region
    _
  $region17: #{tpu_custom_call.1} parent=0 // pred_fallthru
    _
  // Predicated region
  $region18: #{tpu_custom_call.1} parent=0 // pred_check
    _
  $region19: #{tpu_custom_call.1} parent=0 // pred_check_branch
    %29 = sbr.rel (0) target = $region21
  $region20: #{tpu_custom_call.1} parent=0 // pred_region
    _
  $region21: #{tpu_custom_call.1} parent=0 // pred_fallthru
    _
  // Predicated region
  $region22: #{tpu_custom_call.1} parent=0 // pred_check
    _
  $region23: #{tpu_custom_call.1} parent=0 // pred_check_branch
    %31 = sbr.rel (0) target = $region25
  $region24: #{tpu_custom_call.1} parent=0 // pred_region
    _
  $region25: #{tpu_custom_call.1} parent=0 // pred_fallthru
    _
  // Predicated region
  $region26: #{tpu_custom_call.1} parent=0 // pred_check
    _
  $region27: #{tpu_custom_call.1} parent=0 // pred_check_branch
    %33 = sbr.rel (0) target = $region29
  $region28: #{tpu_custom_call.1} parent=0 // pred_region
    _
  $region29: #{tpu_custom_call.1} parent=0 // pred_fallthru
    _
  // Predicated region
  $region30: #{tpu_custom_call.1} parent=0 // pred_check
    _
  $region31: #{tpu_custom_call.1} parent=0 // pred_check_branch
    %35 = sbr.rel (0) target = $region33
  $region32: #{tpu_custom_call.1} parent=0 // pred_region
    _
  $region33: #{tpu_custom_call.1} parent=0 // pred_fallthru
    _
  // Predicated region
  $region34: #{tpu_custom_call.1} parent=0 // pred_check
    _
  $region35: #{tpu_custom_call.1} parent=0 // pred_check_branch
    %37 = sbr.rel (0) target = $region37
  $region36: #{tpu_custom_call.1} parent=0 // pred_region
    _
  $region37: #{tpu_custom_call.1} parent=0 // pred_fallthru
    _
  // Predicated region
  $region38: #{tpu_custom_call.1} parent=0 // pred_check
    _
  $region39: #{tpu_custom_call.1} parent=0 // pred_check_branch
    %39 = sbr.rel (0) target = $region41
  $region40: #{tpu_custom_call.1} parent=0 // pred_region
    _
  $region41: #{tpu_custom_call.1} parent=0 // pred_fallthru
    _
  // Predicated region
  $region42: #{tpu_custom_call.1} parent=0 // pred_check
    _
  $region43: #{tpu_custom_call.1} parent=0 // pred_check_branch
    %41 = sbr.rel (0) target = $region45
  $region44: #{tpu_custom_call.1} parent=0 // pred_region
    _
  $region45: #{tpu_custom_call.1} parent=0 // pred_fallthru
    _
  // Predicated region
  $region46: #{tpu_custom_call.1} parent=0 // pred_check
    _
  $region47: #{tpu_custom_call.1} parent=0 // pred_check_branch
    %43 = sbr.rel (0) target = $region49
  $region48: #{tpu_custom_call.1} parent=0 // pred_region
    _
  $region49: #{tpu_custom_call.1} parent=0 // pred_fallthru
    _
  // Predicated region
  $region50: #{tpu_custom_call.1} parent=0 // pred_check
    _
  $region51: #{tpu_custom_call.1} parent=0 // pred_check_branch
    %45 = sbr.rel (0) target = $region53
  $region52: #{tpu_custom_call.1} parent=0 // pred_region
    _
  $region53: #{tpu_custom_call.1} parent=0 // pred_fallthru
    _
  %v47 = vld [vmem:[%s0] sm:$0xff]
  %v48 = vld [vmem:[%s1] sm:$0x1]
  %v49 = vld [vmem:[%s2] sm:$0x1]
  %vm50 = vcmask 72704
  %v51 = vsel %vm50, %v47, 0.0
  %v52 = vrot.slane %v51, 4
  %v53 = vadd.f32 %v51, %v52
  %v54 = vrot.slane %v53, 2
  %v55 = vadd.f32 %v53, %v54
  %v56 = vrot.slane %v55, 1
  %v57 = vadd.f32 %v55, %v56
  %v58 = vrcp.pop 8.0
  %v59 = vmul.f32 8.0, %v58
  %v60 = vsub.f32 1.0, %v59
  %v61 = vmul.f32 %v58, %v60
  %v62 = vadd.f32 %v58, %v61
  %vm63 = vweird.f32 %v58
  %v64 = vsel %vm63, %v58, %v62
  %v65 = vmul.f32 %v57, %v64
  %v66 = vmul.f32 %v47, %v47
  %v67 = vsel %vm50, %v66, 0.0
  %v68 = vrot.slane %v67, 4
  %v69 = vadd.f32 %v67, %v68
  %v70 = vrot.slane %v69, 2
  %v71 = vadd.f32 %v69, %v70
  %v72 = vrot.slane %v71, 1
  %v73 = vadd.f32 %v71, %v72
  %v74 = vmul.f32 %v73, %v64
  %v75 = vmul.f32 %v65, %v65
  %v76 = vsub.f32 %v74, %v75
  %v77 = vmax.f32 %v76, 0.0
  %v78 = vadd.f32 %v77, 1e-05
  %v79 = vrsqrt.pop %v78
  %v80 = vmul.f32 %v79, %v78
  %v81 = vmul.f32 %v80, %v79
  %v82 = vmul.f32 0.5, %v81
  %v83 = vsub.f32 1.5, %v82
  %v84 = vmul.f32 %v79, %v83
  %vm85 = vweird.f32 %v78
  %vm86 = vweird.f32 %v79
  %vm87 = vmor %vm85, %vm86
  %v88 = vsel %vm87, %v79, %v84
  %v89 = vmul.f32 %v88, %v48
  %v90 = vmul.f32 %v65, %v89
  %v91 = vsub.f32 %v49, %v90
  %v92 = vperm.slane %v89, 0
  %v93 = vmul.f32 %v47, %v92
  %v95 = vperm.slane %v91, 0
  %v97 = vadd.f32 %v93, %v95
  %v98 = vpack.c.bf16 %v97, %v97
  %v99 = vld [vmem:[%s3] sm:$0xff]
  %v100 = vld [vmem:[%s3 + $0x8] sm:$0xff]
  %v101 = vld [vmem:[%s3 + $0x10] sm:$0xff]
  %v102 = vld [vmem:[%s3 + $0x18] sm:$0xff]
  %v103 = vld [vmem:[%s3 + $0x20] sm:$0x11]
  %v104 = vld [vmem:[%s3 + $0x28] sm:$0x11]
  %v105 = vld [vmem:[%s3 + $0x30] sm:$0x11]
  %v106 = vld [vmem:[%s3 + $0x38] sm:$0x11]
  %v107 = vld [vmem:[%s4] sm:$0xff]
  %v109 = vperm.slane %v107, 0
  %v110 = vperm.slane %v107, 1
  %v111 = vperm.slane %v107, 2
  %v112 = vperm.slane %v107, 3
  %v113 = vperm.slane %v107, 4
  %v114 = vperm.slane %v107, 5
  %v115 = vperm.slane %v107, 6
  %v116 = vperm.slane %v107, 7
  %v133 = vunpack.c.l.b16 %v99
  %v134 = vunpack.c.h.b16 %v99
  %v135 = vunpack.c.l.b16 %v100
  %v136 = vunpack.c.h.b16 %v100
  %v137 = vunpack.c.l.b16 %v101
  %v138 = vunpack.c.h.b16 %v101
  %v139 = vunpack.c.l.b16 %v102
  %v140 = vunpack.c.h.b16 %v102
  %v141 = vunpack.c.l.b16 %v103
  %v142 = vunpack.c.h.b16 %v103
  %v143 = vunpack.c.l.b16 %v104
  %v144 = vunpack.c.h.b16 %v104
  %v145 = vunpack.c.l.b16 %v105
  %v146 = vunpack.c.h.b16 %v105
  %v147 = vunpack.c.l.b16 %v106
  %v148 = vunpack.c.h.b16 %v106
  %v149 = vpack.c.b16 %v141, %v133
  %v150 = vpack.c.b16 %v142, %v134
  %v151 = vpack.c.b16 %v143, %v135
  %v152 = vpack.c.b16 %v144, %v136
  %v153 = vpack.c.b16 %v145, %v137
  %v154 = vpack.c.b16 %v146, %v138
  %v155 = vpack.c.b16 %v147, %v139
  %v156 = vpack.c.b16 %v148, %v140
  %v158 = vsel %vm50, %v98, 0
  %vm160 = vcmask 1043456
  %vm161 = vcmask 1044480
  %v162 = vsel %vm160, 4294967295, 65535
  %v163 = vsel %vm161, %v162, 0
  %v165 = vand.u32 %v149, %v163
  %v168 = vand.u32 %v150, %v163
  %v171 = vand.u32 %v151, %v163
  %v174 = vand.u32 %v152, %v163
  %v177 = vand.u32 %v153, %v163
  %v180 = vand.u32 %v154, %v163
  %v183 = vand.u32 %v155, %v163
  %v186 = vand.u32 %v156, %v163
  %188 = vmatpush.bf16.msra.mxu0 0
  %189 = vmatpush.bf16.msra.mxu0 0
  %190 = vmatpush.bf16.msra.mxu0 0
  %191 = vmatpush.bf16.msra.mxu0 0
  %192 = vmatpush.bf16.msra.mxu0 0
  %193 = vmatpush.bf16.msra.mxu0 0
  %194 = vmatpush.bf16.msra.mxu0 0
  %195 = vmatpush.bf16.msra.mxu0 %v165
  %196 = vmatmul.bf16.gmra.mxu0 %v158
  %v197 = vpop.f32.mrf.mxu0
  %v198 = vadd.f32 %v109, %v197
  %v199 = vpop.f32.mrf.mxu0
  %200 = vdwg.mxu0
  %201 = vmatpush.bf16.msra.mxu0 0
  %202 = vmatpush.bf16.msra.mxu0 0
  %203 = vmatpush.bf16.msra.mxu0 0
  %204 = vmatpush.bf16.msra.mxu0 0
  %205 = vmatpush.bf16.msra.mxu0 0
  %206 = vmatpush.bf16.msra.mxu0 0
  %207 = vmatpush.bf16.msra.mxu0 0
  %208 = vmatpush.bf16.msra.mxu0 %v168
  %209 = vmatmul.bf16.gmra.mxu0 %v158
  %v210 = vpop.f32.mrf.mxu0
  %v211 = vadd.f32 %v110, %v210
  %v212 = vpop.f32.mrf.mxu0
  %213 = vdwg.mxu0
  %214 = vmatpush.bf16.msra.mxu0 0
  %215 = vmatpush.bf16.msra.mxu0 0
  %216 = vmatpush.bf16.msra.mxu0 0
  %217 = vmatpush.bf16.msra.mxu0 0
  %218 = vmatpush.bf16.msra.mxu0 0
  %219 = vmatpush.bf16.msra.mxu0 0
  %220 = vmatpush.bf16.msra.mxu0 0
  %221 = vmatpush.bf16.msra.mxu0 %v171
  %222 = vmatmul.bf16.gmra.mxu0 %v158
  %v223 = vpop.f32.mrf.mxu0
  %v224 = vadd.f32 %v111, %v223
  %v225 = vpop.f32.mrf.mxu0
  %226 = vdwg.mxu0
  %227 = vmatpush.bf16.msra.mxu0 0
  %228 = vmatpush.bf16.msra.mxu0 0
  %229 = vmatpush.bf16.msra.mxu0 0
  %230 = vmatpush.bf16.msra.mxu0 0
  %231 = vmatpush.bf16.msra.mxu0 0
  %232 = vmatpush.bf16.msra.mxu0 0
  %233 = vmatpush.bf16.msra.mxu0 0
  %234 = vmatpush.bf16.msra.mxu0 %v174
  %235 = vmatmul.bf16.gmra.mxu0 %v158
  %v236 = vpop.f32.mrf.mxu0
  %v237 = vadd.f32 %v112, %v236
  %v238 = vpop.f32.mrf.mxu0
  %239 = vdwg.mxu0
  %240 = vmatpush.bf16.msra.mxu0 0
  %241 = vmatpush.bf16.msra.mxu0 0
  %242 = vmatpush.bf16.msra.mxu0 0
  %243 = vmatpush.bf16.msra.mxu0 0
  %244 = vmatpush.bf16.msra.mxu0 0
  %245 = vmatpush.bf16.msra.mxu0 0
  %246 = vmatpush.bf16.msra.mxu0 0
  %247 = vmatpush.bf16.msra.mxu0 %v177
  %248 = vmatmul.bf16.gmra.mxu0 %v158
  %v249 = vpop.f32.mrf.mxu0
  %v250 = vadd.f32 %v113, %v249
  %v251 = vpop.f32.mrf.mxu0
  %252 = vdwg.mxu0
  %253 = vmatpush.bf16.msra.mxu0 0
  %254 = vmatpush.bf16.msra.mxu0 0
  %255 = vmatpush.bf16.msra.mxu0 0
  %256 = vmatpush.bf16.msra.mxu0 0
  %257 = vmatpush.bf16.msra.mxu0 0
  %258 = vmatpush.bf16.msra.mxu0 0
  %259 = vmatpush.bf16.msra.mxu0 0
  %260 = vmatpush.bf16.msra.mxu0 %v180
  %261 = vmatmul.bf16.gmra.mxu0 %v158
  %v262 = vpop.f32.mrf.mxu0
  %v263 = vadd.f32 %v114, %v262
  %v264 = vpop.f32.mrf.mxu0
  %265 = vdwg.mxu0
  %266 = vmatpush.bf16.msra.mxu0 0
  %267 = vmatpush.bf16.msra.mxu0 0
  %268 = vmatpush.bf16.msra.mxu0 0
  %269 = vmatpush.bf16.msra.mxu0 0
  %270 = vmatpush.bf16.msra.mxu0 0
  %271 = vmatpush.bf16.msra.mxu0 0
  %272 = vmatpush.bf16.msra.mxu0 0
  %273 = vmatpush.bf16.msra.mxu0 %v183
  %274 = vmatmul.bf16.gmra.mxu0 %v158
  %v275 = vpop.f32.mrf.mxu0
  %v276 = vadd.f32 %v115, %v275
  %v277 = vpop.f32.mrf.mxu0
  %278 = vdwg.mxu0
  %279 = vmatpush.bf16.msra.mxu0 0
  %280 = vmatpush.bf16.msra.mxu0 0
  %281 = vmatpush.bf16.msra.mxu0 0
  %282 = vmatpush.bf16.msra.mxu0 0
  %283 = vmatpush.bf16.msra.mxu0 0
  %284 = vmatpush.bf16.msra.mxu0 0
  %285 = vmatpush.bf16.msra.mxu0 0
  %286 = vmatpush.bf16.msra.mxu0 %v186
  %287 = vmatmul.bf16.gmra.mxu0 %v158
  %v288 = vpop.f32.mrf.mxu0
  %v289 = vadd.f32 %v116, %v288
  %v290 = vpop.f32.mrf.mxu0
  %291 = vdwg.mxu0
  %v292 = vmax.f32 %v198, 0.0
  %v293 = vmax.f32 %v211, 0.0
  %v294 = vmax.f32 %v224, 0.0
  %v295 = vmax.f32 %v237, 0.0
  %v296 = vmax.f32 %v250, 0.0
  %v297 = vmax.f32 %v263, 0.0
  %v298 = vmax.f32 %v276, 0.0
  %v299 = vmax.f32 %v289, 0.0
  %v300 = vld [vmem:[%s5] sm:$0xff]
  %v301 = vld [vmem:[%s6] sm:$0xff]
  %v302 = vrot.slane %v292, 4
  %v303 = vadd.f32 %v292, %v302
  %v304 = vrot.slane %v303, 2
  %v305 = vadd.f32 %v303, %v304
  %v306 = vrot.slane %v305, 1
  %v307 = vadd.f32 %v305, %v306
  %v308 = vrot.slane %v293, 4
  %v309 = vadd.f32 %v293, %v308
  %v310 = vrot.slane %v309, 2
  %v311 = vadd.f32 %v309, %v310
  %v312 = vrot.slane %v311, 1
  %v313 = vadd.f32 %v311, %v312
  %v314 = vrot.slane %v294, 4
  %v315 = vadd.f32 %v294, %v314
  %v316 = vrot.slane %v315, 2
  %v317 = vadd.f32 %v315, %v316
  %v318 = vrot.slane %v317, 1
  %v319 = vadd.f32 %v317, %v318
  %v320 = vrot.slane %v295, 4
  %v321 = vadd.f32 %v295, %v320
  %v322 = vrot.slane %v321, 2
  %v323 = vadd.f32 %v321, %v322
  %v324 = vrot.slane %v323, 1
  %v325 = vadd.f32 %v323, %v324
  %v326 = vrot.slane %v296, 4
  %v327 = vadd.f32 %v296, %v326
  %v328 = vrot.slane %v327, 2
  %v329 = vadd.f32 %v327, %v328
  %v330 = vrot.slane %v329, 1
  %v331 = vadd.f32 %v329, %v330
  %v332 = vrot.slane %v297, 4
  %v333 = vadd.f32 %v297, %v332
  %v334 = vrot.slane %v333, 2
  %v335 = vadd.f32 %v333, %v334
  %v336 = vrot.slane %v335, 1
  %v337 = vadd.f32 %v335, %v336
  %v338 = vrot.slane %v298, 4
  %v339 = vadd.f32 %v298, %v338
  %v340 = vrot.slane %v339, 2
  %v341 = vadd.f32 %v339, %v340
  %v342 = vrot.slane %v341, 1
  %v343 = vadd.f32 %v341, %v342
  %vm344 = vcmask 850944
  %v345 = vsel %vm344, %v299, 0.0
  %v346 = vrot.slane %v345, 4
  %v347 = vadd.f32 %v345, %v346
  %v348 = vrot.slane %v347, 2
  %v349 = vadd.f32 %v347, %v348
  %v350 = vrot.slane %v349, 1
  %v351 = vadd.f32 %v349, %v350
  %v352 = vmul.f32 %v307, %v64
  %v353 = vmul.f32 %v313, %v64
  %v354 = vmul.f32 %v319, %v64
  %v355 = vmul.f32 %v325, %v64
  %v356 = vmul.f32 %v331, %v64
  %v357 = vmul.f32 %v337, %v64
  %v358 = vmul.f32 %v343, %v64
  %v359 = vmul.f32 %v351, %v64
  %v360 = vmul.f32 %v292, %v292
  %v361 = vmul.f32 %v293, %v293
  %v362 = vmul.f32 %v294, %v294
  %v363 = vmul.f32 %v295, %v295
  %v364 = vmul.f32 %v296, %v296
  %v365 = vmul.f32 %v297, %v297
  %v366 = vmul.f32 %v298, %v298
  %v367 = vmul.f32 %v299, %v299
  %v368 = vrot.slane %v360, 4
  %v369 = vadd.f32 %v360, %v368
  %v370 = vrot.slane %v369, 2
  %v371 = vadd.f32 %v369, %v370
  %v372 = vrot.slane %v371, 1
  %v373 = vadd.f32 %v371, %v372
  %v374 = vrot.slane %v361, 4
  %v375 = vadd.f32 %v361, %v374
  %v376 = vrot.slane %v375, 2
  %v377 = vadd.f32 %v375, %v376
  %v378 = vrot.slane %v377, 1
  %v379 = vadd.f32 %v377, %v378
  %v380 = vrot.slane %v362, 4
  %v381 = vadd.f32 %v362, %v380
  %v382 = vrot.slane %v381, 2
  %v383 = vadd.f32 %v381, %v382
  %v384 = vrot.slane %v383, 1
  %v385 = vadd.f32 %v383, %v384
  %v386 = vrot.slane %v363, 4
  %v387 = vadd.f32 %v363, %v386
  %v388 = vrot.slane %v387, 2
  %v389 = vadd.f32 %v387, %v388
  %v390 = vrot.slane %v389, 1
  %v391 = vadd.f32 %v389, %v390
  %v392 = vrot.slane %v364, 4
  %v393 = vadd.f32 %v364, %v392
  %v394 = vrot.slane %v393, 2
  %v395 = vadd.f32 %v393, %v394
  %v396 = vrot.slane %v395, 1
  %v397 = vadd.f32 %v395, %v396
  %v398 = vrot.slane %v365, 4
  %v399 = vadd.f32 %v365, %v398
  %v400 = vrot.slane %v399, 2
  %v401 = vadd.f32 %v399, %v400
  %v402 = vrot.slane %v401, 1
  %v403 = vadd.f32 %v401, %v402
  %v404 = vrot.slane %v366, 4
  %v405 = vadd.f32 %v366, %v404
  %v406 = vrot.slane %v405, 2
  %v407 = vadd.f32 %v405, %v406
  %v408 = vrot.slane %v407, 1
  %v409 = vadd.f32 %v407, %v408
  %v410 = vsel %vm344, %v367, 0.0
  %v411 = vrot.slane %v410, 4
  %v412 = vadd.f32 %v410, %v411
  %v413 = vrot.slane %v412, 2
  %v414 = vadd.f32 %v412, %v413
  %v415 = vrot.slane %v414, 1
  %v416 = vadd.f32 %v414, %v415
  %v417 = vmul.f32 %v373, %v64
  %v418 = vmul.f32 %v379, %v64
  %v419 = vmul.f32 %v385, %v64
  %v420 = vmul.f32 %v391, %v64
  %v421 = vmul.f32 %v397, %v64
  %v422 = vmul.f32 %v403, %v64
  %v423 = vmul.f32 %v409, %v64
  %v424 = vmul.f32 %v416, %v64
  %v425 = vmul.f32 %v352, %v352
  %v426 = vmul.f32 %v353, %v353
  %v427 = vmul.f32 %v354, %v354
  %v428 = vmul.f32 %v355, %v355
  %v429 = vmul.f32 %v356, %v356
  %v430 = vmul.f32 %v357, %v357
  %v431 = vmul.f32 %v358, %v358
  %v432 = vmul.f32 %v359, %v359
  %v433 = vsub.f32 %v417, %v425
  %v434 = vsub.f32 %v418, %v426
  %v435 = vsub.f32 %v419, %v427
  %v436 = vsub.f32 %v420, %v428
  %v437 = vsub.f32 %v421, %v429
  %v438 = vsub.f32 %v422, %v430
  %v439 = vsub.f32 %v423, %v431
  %v440 = vsub.f32 %v424, %v432
  %v441 = vmax.f32 %v433, 0.0
  %v442 = vmax.f32 %v434, 0.0
  %v443 = vmax.f32 %v435, 0.0
  %v444 = vmax.f32 %v436, 0.0
  %v445 = vmax.f32 %v437, 0.0
  %v446 = vmax.f32 %v438, 0.0
  %v447 = vmax.f32 %v439, 0.0
  %v448 = vmax.f32 %v440, 0.0
  %v449 = vadd.f32 %v441, 1e-05
  %v450 = vadd.f32 %v442, 1e-05
  %v451 = vadd.f32 %v443, 1e-05
  %v452 = vadd.f32 %v444, 1e-05
  %v453 = vadd.f32 %v445, 1e-05
  %v454 = vadd.f32 %v446, 1e-05
  %v455 = vadd.f32 %v447, 1e-05
  %v456 = vadd.f32 %v448, 1e-05
  %v457 = vrsqrt.pop %v449
  %v458 = vmul.f32 %v457, %v449
  %v459 = vmul.f32 %v458, %v457
  %v460 = vmul.f32 0.5, %v459
  %v461 = vsub.f32 1.5, %v460
  %v462 = vmul.f32 %v457, %v461
  %vm463 = vweird.f32 %v449
  %vm464 = vweird.f32 %v457
  %vm465 = vmor %vm463, %vm464
  %v466 = vsel %vm465, %v457, %v462
  %v467 = vrsqrt.pop %v450
  %v468 = vmul.f32 %v467, %v450
  %v469 = vmul.f32 %v468, %v467
  %v470 = vmul.f32 0.5, %v469
  %v471 = vsub.f32 1.5, %v470
  %v472 = vmul.f32 %v467, %v471
  %vm473 = vweird.f32 %v450
  %vm474 = vweird.f32 %v467
  %vm475 = vmor %vm473, %vm474
  %v476 = vsel %vm475, %v467, %v472
  %v477 = vrsqrt.pop %v451
  %v478 = vmul.f32 %v477, %v451
  %v479 = vmul.f32 %v478, %v477
  %v480 = vmul.f32 0.5, %v479
  %v481 = vsub.f32 1.5, %v480
  %v482 = vmul.f32 %v477, %v481
  %vm483 = vweird.f32 %v451
  %vm484 = vweird.f32 %v477
  %vm485 = vmor %vm483, %vm484
  %v486 = vsel %vm485, %v477, %v482
  %v487 = vrsqrt.pop %v452
  %v488 = vmul.f32 %v487, %v452
  %v489 = vmul.f32 %v488, %v487
  %v490 = vmul.f32 0.5, %v489
  %v491 = vsub.f32 1.5, %v490
  %v492 = vmul.f32 %v487, %v491
  %vm493 = vweird.f32 %v452
  %vm494 = vweird.f32 %v487
  %vm495 = vmor %vm493, %vm494
  %v496 = vsel %vm495, %v487, %v492
  %v497 = vrsqrt.pop %v453
  %v498 = vmul.f32 %v497, %v453
  %v499 = vmul.f32 %v498, %v497
  %v500 = vmul.f32 0.5, %v499
  %v501 = vsub.f32 1.5, %v500
  %v502 = vmul.f32 %v497, %v501
  %vm503 = vweird.f32 %v453
  %vm504 = vweird.f32 %v497
  %vm505 = vmor %vm503, %vm504
  %v506 = vsel %vm505, %v497, %v502
  %v507 = vrsqrt.pop %v454
  %v508 = vmul.f32 %v507, %v454
  %v509 = vmul.f32 %v508, %v507
  %v510 = vmul.f32 0.5, %v509
  %v511 = vsub.f32 1.5, %v510
  %v512 = vmul.f32 %v507, %v511
  %vm513 = vweird.f32 %v454
  %vm514 = vweird.f32 %v507
  %vm515 = vmor %vm513, %vm514
  %v516 = vsel %vm515, %v507, %v512
  %v517 = vrsqrt.pop %v455
  %v518 = vmul.f32 %v517, %v455
  %v519 = vmul.f32 %v518, %v517
  %v520 = vmul.f32 0.5, %v519
  %v521 = vsub.f32 1.5, %v520
  %v522 = vmul.f32 %v517, %v521
  %vm523 = vweird.f32 %v455
  %vm524 = vweird.f32 %v517
  %vm525 = vmor %vm523, %vm524
  %v526 = vsel %vm525, %v517, %v522
  %v527 = vrsqrt.pop %v456
  %v528 = vmul.f32 %v527, %v456
  %v529 = vmul.f32 %v528, %v527
  %v530 = vmul.f32 0.5, %v529
  %v531 = vsub.f32 1.5, %v530
  %v532 = vmul.f32 %v527, %v531
  %vm533 = vweird.f32 %v456
  %vm534 = vweird.f32 %v527
  %vm535 = vmor %vm533, %vm534
  %v536 = vsel %vm535, %v527, %v532
  %v538 = vperm.slane %v300, 0
  %v539 = vperm.slane %v300, 1
  %v540 = vperm.slane %v300, 2
  %v541 = vperm.slane %v300, 3
  %v542 = vperm.slane %v300, 4
  %v543 = vperm.slane %v300, 5
  %v544 = vperm.slane %v300, 6
  %v545 = vperm.slane %v300, 7
  %v554 = vmul.f32 %v466, %v538
  %v555 = vmul.f32 %v476, %v539
  %v556 = vmul.f32 %v486, %v540
  %v557 = vmul.f32 %v496, %v541
  %v558 = vmul.f32 %v506, %v542
  %v559 = vmul.f32 %v516, %v543
  %v560 = vmul.f32 %v526, %v544
  %v561 = vmul.f32 %v536, %v545
  %v562 = vmul.f32 %v352, %v554
  %v563 = vmul.f32 %v353, %v555
  %v564 = vmul.f32 %v354, %v556
  %v565 = vmul.f32 %v355, %v557
  %v566 = vmul.f32 %v356, %v558
  %v567 = vmul.f32 %v357, %v559
  %v568 = vmul.f32 %v358, %v560
  %v569 = vmul.f32 %v359, %v561
  %v578 = vrot.slane %v563, 7
  %v579 = vrot.slane %v564, 6
  %v580 = vrot.slane %v565, 5
  %v581 = vrot.slane %v566, 4
  %v582 = vrot.slane %v567, 3
  %v583 = vrot.slane %v568, 2
  %v584 = vrot.slane %v569, 1
  %vm585 = vcmask 1040384
  %v586 = vsel %vm585, %v562, %v578
  %vm587 = vcmask 1042434
  %v588 = vsel %vm587, %v579, %v580
  %vm589 = vcmask 1041408
  %v590 = vsel %vm589, %v586, %v588
  %vm591 = vcmask 1044484
  %v592 = vsel %vm591, %v581, %v582
  %vm593 = vcmask 1046534
  %v594 = vsel %vm593, %v583, %v584
  %vm595 = vcmask 1045508
  %v596 = vsel %vm595, %v592, %v594
  %v597 = vsel %vm160, %v590, %v596
  %v599 = vsub.f32 %v301, %v597
  %v600 = vperm.slane %v554, 0
  %v601 = vperm.slane %v555, 0
  %v602 = vperm.slane %v556, 0
  %v603 = vperm.slane %v557, 0
  %v604 = vperm.slane %v558, 0
  %v605 = vperm.slane %v559, 0
  %v606 = vperm.slane %v560, 0
  %v607 = vperm.slane %v561, 0
  %v608 = vmul.f32 %v292, %v600
  %v609 = vmul.f32 %v293, %v601
  %v610 = vmul.f32 %v294, %v602
  %v611 = vmul.f32 %v295, %v603
  %v612 = vmul.f32 %v296, %v604
  %v613 = vmul.f32 %v297, %v605
  %v614 = vmul.f32 %v298, %v606
  %v615 = vmul.f32 %v299, %v607
  %v617 = vperm.slane %v599, 0
  %v618 = vperm.slane %v599, 1
  %v619 = vperm.slane %v599, 2
  %v620 = vperm.slane %v599, 3
  %v621 = vperm.slane %v599, 4
  %v622 = vperm.slane %v599, 5
  %v623 = vperm.slane %v599, 6
  %v624 = vperm.slane %v599, 7
  %v633 = vadd.f32 %v608, %v617
  %v634 = vadd.f32 %v609, %v618
  %v635 = vadd.f32 %v610, %v619
  %v636 = vadd.f32 %v611, %v620
  %v637 = vadd.f32 %v612, %v621
  %v638 = vadd.f32 %v613, %v622
  %v639 = vadd.f32 %v614, %v623
  %v640 = vadd.f32 %v615, %v624
  %v641 = vmax.f32 %v633, %v637
  %v642 = vmax.f32 %v634, %v638
  %v643 = vmax.f32 %v635, %v639
  %v644 = vsel %vm344, %v640, -inf
  %v645 = vmax.f32 %v636, %v644
  %v646 = vmax.f32 %v641, %v642
  %v647 = vmax.f32 %v643, %v645
  %v648 = vmax.f32 %v646, %v647
  %649 = vmax.xlane.f32.xlu0 %v648
  %v650 = vpop.xlane.xlu0 %649
  %v651 = vsub.f32 %v633, %v650
  %v652 = vsub.f32 %v634, %v650
  %v653 = vsub.f32 %v635, %v650
  %v654 = vsub.f32 %v636, %v650
  %v655 = vsub.f32 %v637, %v650
  %v656 = vsub.f32 %v638, %v650
  %v657 = vsub.f32 %v639, %v650
  %v658 = vsub.f32 %v640, %v650
  %v659 = vmul.f32 %v651, 1.442695
  %v660 = vpow.pop %v659
  %v661 = vmul.f32 %v652, 1.442695
  %v662 = vpow.pop %v661
  %v663 = vmul.f32 %v653, 1.442695
  %v664 = vpow.pop %v663
  %v665 = vmul.f32 %v654, 1.442695
  %v666 = vpow.pop %v665
  %v667 = vmul.f32 %v655, 1.442695
  %v668 = vpow.pop %v667
  %v669 = vmul.f32 %v656, 1.442695
  %v670 = vpow.pop %v669
  %v671 = vmul.f32 %v657, 1.442695
  %v672 = vpow.pop %v671
  %v673 = vmul.f32 %v658, 1.442695
  %v674 = vpow.pop %v673
  %v675 = vadd.f32 %v660, %v662
  %v676 = vadd.f32 %v675, %v664
  %v677 = vadd.f32 %v676, %v666
  %v678 = vadd.f32 %v677, %v668
  %v679 = vadd.f32 %v678, %v670
  %v680 = vadd.f32 %v679, %v672
  %v681 = vsel %vm344, %v674, 0.0
  %v682 = vadd.f32 %v680, %v681
  %683 = vadd.xlane.f32.xlu0 %v682
  %v684 = vpop.xlane.xlu0 %683
  %v685 = vpack.c.bf16 %v660, %v660
  %v686 = vpack.c.bf16 %v662, %v662
  %v687 = vpack.c.bf16 %v664, %v664
  %v688 = vpack.c.bf16 %v666, %v666
  %v689 = vpack.c.bf16 %v668, %v668
  %v690 = vpack.c.bf16 %v670, %v670
  %v691 = vpack.c.bf16 %v672, %v672
  %v692 = vpack.c.bf16 %v674, %v674
  %v693 = vld [vmem:[%s7] sm:$0xf]
  %v694 = vld [vmem:[%s7 + $0x4] sm:$0xf]
  %v695 = vld [vmem:[%s7 + $0x8] sm:$0xf]
  %v696 = vld [vmem:[%s7 + $0xc] sm:$0xf]
  %v697 = vld [vmem:[%s7 + $0x10] sm:$0xf]
  %v698 = vld [vmem:[%s7 + $0x14] sm:$0xf]
  %v699 = vld [vmem:[%s7 + $0x18] sm:$0xf]
  %v700 = vld [vmem:[%s7 + $0x1c] sm:$0xf]
  %v701 = vld [vmem:[%s7 + $0x20] sm:$0xf]
  %v702 = vld [vmem:[%s7 + $0x24] sm:$0xf]
  %v703 = vld [vmem:[%s7 + $0x28] sm:$0xf]
  %v704 = vld [vmem:[%s7 + $0x2c] sm:$0xf]
  %v705 = vld [vmem:[%s7 + $0x30] sm:$0xf]
  %v706 = vld [vmem:[%s7 + $0x34] sm:$0xf]
  %v707 = vld [vmem:[%s7 + $0x38] sm:$0xf]
  %v708 = vld [vmem:[%s7 + $0x3c] sm:$0xf]
  %v709 = vld [vmem:[%s7 + $0x40] sm:$0xf]
  %v710 = vld [vmem:[%s7 + $0x44] sm:$0xf]
  %v711 = vld [vmem:[%s7 + $0x48] sm:$0xf]
  %v712 = vld [vmem:[%s7 + $0x4c] sm:$0xf]
  %v713 = vld [vmem:[%s7 + $0x50] sm:$0xf]
  %v714 = vld [vmem:[%s7 + $0x54] sm:$0xf]
  %v715 = vld [vmem:[%s7 + $0x58] sm:$0xf]
  %v716 = vld [vmem:[%s7 + $0x5c] sm:$0xf]
  %v717 = vld [vmem:[%s7 + $0x60] sm:$0xf]
  %v718 = vld [vmem:[%s7 + $0x64] sm:$0xf]
  %v719 = vld [vmem:[%s7 + $0x68] sm:$0xf]
  %v720 = vld [vmem:[%s7 + $0x6c] sm:$0xf]
  %v721 = vld [vmem:[%s7 + $0x70] sm:$0xf]
  %v722 = vld [vmem:[%s7 + $0x74] sm:$0xf]
  %v723 = vld [vmem:[%s7 + $0x78] sm:$0xf]
  %v724 = vld [vmem:[%s7 + $0x7c] sm:$0xf]
  %v725 = vld [vmem:[%s7 + $0x80] sm:$0xf]
  %v726 = vld [vmem:[%s7 + $0x84] sm:$0xf]
  %v727 = vld [vmem:[%s7 + $0x88] sm:$0xf]
  %v728 = vld [vmem:[%s7 + $0x8c] sm:$0xf]
  %v729 = vld [vmem:[%s7 + $0x90] sm:$0xf]
  %v730 = vld [vmem:[%s7 + $0x94] sm:$0xf]
  %v731 = vld [vmem:[%s7 + $0x98] sm:$0xf]
  %v732 = vld [vmem:[%s7 + $0x9c] sm:$0xf]
  %v733 = vld [vmem:[%s7 + $0xa0] sm:$0xf]
  %v734 = vld [vmem:[%s7 + $0xa4] sm:$0xf]
  %v735 = vld [vmem:[%s7 + $0xa8] sm:$0xf]
  %v736 = vld [vmem:[%s7 + $0xac] sm:$0xf]
  %v737 = vld [vmem:[%s7 + $0xb0] sm:$0xf]
  %v738 = vld [vmem:[%s7 + $0xb4] sm:$0xf]
  %v739 = vld [vmem:[%s7 + $0xb8] sm:$0xf]
  %v740 = vld [vmem:[%s7 + $0xbc] sm:$0xf]
  %v741 = vld [vmem:[%s7 + $0xc0] sm:$0xf]
  %v742 = vld [vmem:[%s7 + $0xc4] sm:$0xf]
  %v743 = vld [vmem:[%s7 + $0xc8] sm:$0xf]
  %v744 = vld [vmem:[%s7 + $0xcc] sm:$0xf]
  %v745 = vld [vmem:[%s7 + $0xd0] sm:$0xf]
  %v746 = vld [vmem:[%s7 + $0xd4] sm:$0xf]
  %v747 = vld [vmem:[%s7 + $0xd8] sm:$0xf]
  %v748 = vld [vmem:[%s7 + $0xdc] sm:$0xf]
  %v749 = vld [vmem:[%s7 + $0xe0] sm:$0xf]
  %v750 = vld [vmem:[%s7 + $0xe4] sm:$0xf]
  %v751 = vld [vmem:[%s7 + $0xe8] sm:$0xf]
  %v752 = vld [vmem:[%s7 + $0xec] sm:$0xf]
  %v753 = vld [vmem:[%s7 + $0xf0] sm:$0xf]
  %v754 = vld [vmem:[%s7 + $0xf4] sm:$0xf]
  %v755 = vld [vmem:[%s7 + $0xf8] sm:$0xf]
  %v756 = vld [vmem:[%s7 + $0xfc] sm:$0xf]
  %v757 = vld [vmem:[%s7 + $0x100] sm:$0xf]
  %v758 = vld [vmem:[%s7 + $0x104] sm:$0xf]
  %v759 = vld [vmem:[%s7 + $0x108] sm:$0xf]
  %v760 = vld [vmem:[%s7 + $0x10c] sm:$0xf]
  %v761 = vld [vmem:[%s7 + $0x110] sm:$0xf]
  %v762 = vld [vmem:[%s7 + $0x114] sm:$0xf]
  %v763 = vld [vmem:[%s7 + $0x118] sm:$0xf]
  %v764 = vld [vmem:[%s7 + $0x11c] sm:$0xf]
  %v765 = vld [vmem:[%s7 + $0x120] sm:$0xf]
  %v766 = vld [vmem:[%s7 + $0x124] sm:$0xf]
  %v767 = vld [vmem:[%s7 + $0x128] sm:$0xf]
  %v768 = vld [vmem:[%s7 + $0x12c] sm:$0xf]
  %v769 = vld [vmem:[%s7 + $0x130] sm:$0xf]
  %v770 = vld [vmem:[%s7 + $0x134] sm:$0xf]
  %v771 = vld [vmem:[%s7 + $0x138] sm:$0xf]
  %v772 = vld [vmem:[%s7 + $0x13c] sm:$0xf]
  %v773 = vld [vmem:[%s7 + $0x140] sm:$0xf]
  %v774 = vld [vmem:[%s7 + $0x144] sm:$0xf]
  %v775 = vld [vmem:[%s7 + $0x148] sm:$0xf]
  %v776 = vld [vmem:[%s7 + $0x14c] sm:$0xf]
  %v777 = vld [vmem:[%s7 + $0x150] sm:$0xf]
  %v778 = vld [vmem:[%s7 + $0x154] sm:$0xf]
  %v779 = vld [vmem:[%s7 + $0x158] sm:$0xf]
  %v780 = vld [vmem:[%s7 + $0x15c] sm:$0xf]
  %v781 = vld [vmem:[%s7 + $0x160] sm:$0xf]
  %v782 = vld [vmem:[%s7 + $0x164] sm:$0xf]
  %v783 = vld [vmem:[%s7 + $0x168] sm:$0xf]
  %v784 = vld [vmem:[%s7 + $0x16c] sm:$0xf]
  %v785 = vld [vmem:[%s7 + $0x170] sm:$0xf]
  %v786 = vld [vmem:[%s7 + $0x174] sm:$0xf]
  %v787 = vld [vmem:[%s7 + $0x178] sm:$0xf]
  %v788 = vld [vmem:[%s7 + $0x17c] sm:$0xf]
  %v789 = vld [vmem:[%s7 + $0x180] sm:$0xf]
  %v790 = vld [vmem:[%s7 + $0x184] sm:$0xf]
  %v791 = vld [vmem:[%s7 + $0x188] sm:$0xf]
  %v792 = vld [vmem:[%s7 + $0x18c] sm:$0xf]
  %v793 = vld [vmem:[%s7 + $0x190] sm:$0xf]
  %v794 = vld [vmem:[%s7 + $0x194] sm:$0xf]
  %v795 = vld [vmem:[%s7 + $0x198] sm:$0xf]
  %v796 = vld [vmem:[%s7 + $0x19c] sm:$0xf]
  %v797 = vld [vmem:[%s7 + $0x1a0] sm:$0xf]
  %v798 = vld [vmem:[%s7 + $0x1a4] sm:$0xf]
  %v799 = vld [vmem:[%s7 + $0x1a8] sm:$0xf]
  %v800 = vld [vmem:[%s7 + $0x1ac] sm:$0xf]
  %v801 = vld [vmem:[%s7 + $0x1b0] sm:$0xf]
  %v802 = vld [vmem:[%s7 + $0x1b4] sm:$0xf]
  %v803 = vld [vmem:[%s7 + $0x1b8] sm:$0xf]
  %v804 = vld [vmem:[%s7 + $0x1bc] sm:$0xf]
  %v805 = vld [vmem:[%s7 + $0x1c0] sm:$0xf]
  %v806 = vld [vmem:[%s7 + $0x1c4] sm:$0xf]
  %v807 = vld [vmem:[%s7 + $0x1c8] sm:$0xf]
  %v808 = vld [vmem:[%s7 + $0x1cc] sm:$0xf]
  %v809 = vld [vmem:[%s7 + $0x1d0] sm:$0xf]
  %v810 = vld [vmem:[%s7 + $0x1d4] sm:$0xf]
  %v811 = vld [vmem:[%s7 + $0x1d8] sm:$0xf]
  %v812 = vld [vmem:[%s7 + $0x1dc] sm:$0xf]
  %v813 = vld [vmem:[%s7 + $0x1e0] sm:$0xf]
  %v814 = vld [vmem:[%s7 + $0x1e4] sm:$0xf]
  %v815 = vld [vmem:[%s7 + $0x1e8] sm:$0xf]
  %v816 = vld [vmem:[%s7 + $0x1ec] sm:$0xf]
  %v817 = vld [vmem:[%s7 + $0x1f0] sm:$0xf]
  %v818 = vld [vmem:[%s8] sm:$0x1]
  %v820 = vperm.slane %v818, 0
  %v822 = vmul.f32 %v684, %v820
  %v948 = vunpack.c.l.b16 %v693
  %v949 = vunpack.c.l.b16 %v694
  %v950 = vunpack.c.l.b16 %v695
  %v951 = vunpack.c.l.b16 %v696
  %v952 = vunpack.c.l.b16 %v697
  %v953 = vunpack.c.l.b16 %v698
  %v954 = vunpack.c.l.b16 %v699
  %v955 = vunpack.c.l.b16 %v700
  %v956 = vunpack.c.l.b16 %v701
  %v957 = vunpack.c.l.b16 %v702
  %v958 = vunpack.c.l.b16 %v703
  %v959 = vunpack.c.l.b16 %v704
  %v960 = vunpack.c.l.b16 %v705
  %v961 = vunpack.c.l.b16 %v706
  %v962 = vunpack.c.l.b16 %v707
  %v963 = vunpack.c.l.b16 %v708
  %v964 = vunpack.c.l.b16 %v709
  %v965 = vunpack.c.l.b16 %v710
  %v966 = vunpack.c.l.b16 %v711
  %v967 = vunpack.c.l.b16 %v712
  %v968 = vunpack.c.l.b16 %v713
  %v969 = vunpack.c.l.b16 %v714
  %v970 = vunpack.c.l.b16 %v715
  %v971 = vunpack.c.l.b16 %v716
  %v972 = vunpack.c.l.b16 %v717
  %v973 = vunpack.c.l.b16 %v718
  %v974 = vunpack.c.l.b16 %v719
  %v975 = vunpack.c.l.b16 %v720
  %v976 = vunpack.c.l.b16 %v721
  %v977 = vunpack.c.l.b16 %v722
  %v978 = vunpack.c.l.b16 %v723
  %v979 = vunpack.c.l.b16 %v724
  %v980 = vunpack.c.l.b16 %v725
  %v981 = vunpack.c.l.b16 %v726
  %v982 = vunpack.c.l.b16 %v727
  %v983 = vunpack.c.l.b16 %v728
  %v984 = vunpack.c.l.b16 %v729
  %v985 = vunpack.c.l.b16 %v730
  %v986 = vunpack.c.l.b16 %v731
  %v987 = vunpack.c.l.b16 %v732
  %v988 = vunpack.c.l.b16 %v733
  %v989 = vunpack.c.l.b16 %v734
  %v990 = vunpack.c.l.b16 %v735
  %v991 = vunpack.c.l.b16 %v736
  %v992 = vunpack.c.l.b16 %v737
  %v993 = vunpack.c.l.b16 %v738
  %v994 = vunpack.c.l.b16 %v739
  %v995 = vunpack.c.l.b16 %v740
  %v996 = vunpack.c.l.b16 %v741
  %v997 = vunpack.c.l.b16 %v742
  %v998 = vunpack.c.l.b16 %v743
  %v999 = vunpack.c.l.b16 %v744
  %v1000 = vunpack.c.l.b16 %v745
  %v1001 = vunpack.c.l.b16 %v746
  %v1002 = vunpack.c.l.b16 %v747
  %v1003 = vunpack.c.l.b16 %v748
  %v1004 = vunpack.c.l.b16 %v749
  %v1005 = vunpack.c.l.b16 %v750
  %v1006 = vunpack.c.l.b16 %v751
  %v1007 = vunpack.c.l.b16 %v752
  %v1008 = vunpack.c.l.b16 %v753
  %v1009 = vunpack.c.l.b16 %v754
  %v1010 = vunpack.c.l.b16 %v755
  %v1011 = vunpack.c.l.b16 %v756
  %v1012 = vunpack.c.l.b16 %v757
  %v1013 = vunpack.c.l.b16 %v758
  %v1014 = vunpack.c.l.b16 %v759
  %v1015 = vunpack.c.l.b16 %v760
  %v1016 = vunpack.c.l.b16 %v761
  %v1017 = vunpack.c.l.b16 %v762
  %v1018 = vunpack.c.l.b16 %v763
  %v1019 = vunpack.c.l.b16 %v764
  %v1020 = vunpack.c.l.b16 %v765
  %v1021 = vunpack.c.l.b16 %v766
  %v1022 = vunpack.c.l.b16 %v767
  %v1023 = vunpack.c.l.b16 %v768
  %v1024 = vunpack.c.l.b16 %v769
  %v1025 = vunpack.c.l.b16 %v770
  %v1026 = vunpack.c.l.b16 %v771
  %v1027 = vunpack.c.l.b16 %v772
  %v1028 = vunpack.c.l.b16 %v773
  %v1029 = vunpack.c.l.b16 %v774
  %v1030 = vunpack.c.l.b16 %v775
  %v1031 = vunpack.c.l.b16 %v776
  %v1032 = vunpack.c.l.b16 %v777
  %v1033 = vunpack.c.l.b16 %v778
  %v1034 = vunpack.c.l.b16 %v779
  %v1035 = vunpack.c.l.b16 %v780
  %v1036 = vunpack.c.l.b16 %v781
  %v1037 = vunpack.c.l.b16 %v782
  %v1038 = vunpack.c.l.b16 %v783
  %v1039 = vunpack.c.l.b16 %v784
  %v1040 = vunpack.c.l.b16 %v785
  %v1041 = vunpack.c.l.b16 %v786
  %v1042 = vunpack.c.l.b16 %v787
  %v1043 = vunpack.c.l.b16 %v788
  %v1044 = vunpack.c.l.b16 %v789
  %v1045 = vunpack.c.l.b16 %v790
  %v1046 = vunpack.c.l.b16 %v791
  %v1047 = vunpack.c.l.b16 %v792
  %v1048 = vunpack.c.l.b16 %v793
  %v1049 = vunpack.c.l.b16 %v794
  %v1050 = vunpack.c.l.b16 %v795
  %v1051 = vunpack.c.l.b16 %v796
  %v1052 = vunpack.c.l.b16 %v797
  %v1053 = vunpack.c.l.b16 %v798
  %v1054 = vunpack.c.l.b16 %v799
  %v1055 = vunpack.c.l.b16 %v800
  %v1056 = vunpack.c.l.b16 %v801
  %v1057 = vunpack.c.l.b16 %v802
  %v1058 = vunpack.c.l.b16 %v803
  %v1059 = vunpack.c.l.b16 %v804
  %v1060 = vunpack.c.l.b16 %v805
  %v1061 = vunpack.c.l.b16 %v806
  %v1062 = vunpack.c.l.b16 %v807
  %v1063 = vunpack.c.l.b16 %v808
  %v1064 = vunpack.c.l.b16 %v809
  %v1065 = vunpack.c.l.b16 %v810
  %v1066 = vunpack.c.l.b16 %v811
  %v1067 = vunpack.c.l.b16 %v812
  %v1068 = vunpack.c.l.b16 %v813
  %v1069 = vunpack.c.l.b16 %v814
  %v1070 = vunpack.c.l.b16 %v815
  %v1071 = vunpack.c.l.b16 %v816
  %v1072 = vunpack.c.l.b16 %v817
  %v1073 = vpack.c.b16 %v949, %v948
  %v1074 = vpack.c.b16 %v951, %v950
  %v1075 = vpack.c.b16 %v953, %v952
  %v1076 = vpack.c.b16 %v955, %v954
  %v1077 = vpack.c.b16 %v957, %v956
  %v1078 = vpack.c.b16 %v959, %v958
  %v1079 = vpack.c.b16 %v961, %v960
  %v1080 = vpack.c.b16 %v963, %v962
  %v1081 = vpack.c.b16 %v965, %v964
  %v1082 = vpack.c.b16 %v967, %v966
  %v1083 = vpack.c.b16 %v969, %v968
  %v1084 = vpack.c.b16 %v971, %v970
  %v1085 = vpack.c.b16 %v973, %v972
  %v1086 = vpack.c.b16 %v975, %v974
  %v1087 = vpack.c.b16 %v977, %v976
  %v1088 = vpack.c.b16 %v979, %v978
  %v1089 = vpack.c.b16 %v981, %v980
  %v1090 = vpack.c.b16 %v983, %v982
  %v1091 = vpack.c.b16 %v985, %v984
  %v1092 = vpack.c.b16 %v987, %v986
  %v1093 = vpack.c.b16 %v989, %v988
  %v1094 = vpack.c.b16 %v991, %v990
  %v1095 = vpack.c.b16 %v993, %v992
  %v1096 = vpack.c.b16 %v995, %v994
  %v1097 = vpack.c.b16 %v997, %v996
  %v1098 = vpack.c.b16 %v999, %v998
  %v1099 = vpack.c.b16 %v1001, %v1000
  %v1100 = vpack.c.b16 %v1003, %v1002
  %v1101 = vpack.c.b16 %v1005, %v1004
  %v1102 = vpack.c.b16 %v1007, %v1006
  %v1103 = vpack.c.b16 %v1009, %v1008
  %v1104 = vpack.c.b16 %v1011, %v1010
  %v1105 = vpack.c.b16 %v1013, %v1012
  %v1106 = vpack.c.b16 %v1015, %v1014
  %v1107 = vpack.c.b16 %v1017, %v1016
  %v1108 = vpack.c.b16 %v1019, %v1018
  %v1109 = vpack.c.b16 %v1021, %v1020
  %v1110 = vpack.c.b16 %v1023, %v1022
  %v1111 = vpack.c.b16 %v1025, %v1024
  %v1112 = vpack.c.b16 %v1027, %v1026
  %v1113 = vpack.c.b16 %v1029, %v1028
  %v1114 = vpack.c.b16 %v1031, %v1030
  %v1115 = vpack.c.b16 %v1033, %v1032
  %v1116 = vpack.c.b16 %v1035, %v1034
  %v1117 = vpack.c.b16 %v1037, %v1036
  %v1118 = vpack.c.b16 %v1039, %v1038
  %v1119 = vpack.c.b16 %v1041, %v1040
  %v1120 = vpack.c.b16 %v1043, %v1042
  %v1121 = vpack.c.b16 %v1045, %v1044
  %v1122 = vpack.c.b16 %v1047, %v1046
  %v1123 = vpack.c.b16 %v1049, %v1048
  %v1124 = vpack.c.b16 %v1051, %v1050
  %v1125 = vpack.c.b16 %v1053, %v1052
  %v1126 = vpack.c.b16 %v1055, %v1054
  %v1127 = vpack.c.b16 %v1057, %v1056
  %v1128 = vpack.c.b16 %v1059, %v1058
  %v1129 = vpack.c.b16 %v1061, %v1060
  %v1130 = vpack.c.b16 %v1063, %v1062
  %v1131 = vpack.c.b16 %v1065, %v1064
  %v1132 = vpack.c.b16 %v1067, %v1066
  %v1133 = vpack.c.b16 %v1069, %v1068
  %v1134 = vpack.c.b16 %v1071, %v1070
  %v1135 = vpack.c.b16 %v1072, %v1072
  %v1199 = vsel %vm344, %v692, 0
  %v1202 = vsel %vm160, %v1135, 0
  %1204 = vmatpush.bf16.msra.mxu0 %v1080
  %1205 = vmatpush.bf16.msra.mxu0 %v1079
  %1206 = vmatpush.bf16.msra.mxu0 %v1078
  %1207 = vmatpush.bf16.msra.mxu0 %v1077
  %1208 = vmatpush.bf16.msra.mxu0 %v1076
  %1209 = vmatpush.bf16.msra.mxu0 %v1075
  %1210 = vmatpush.bf16.msra.mxu0 %v1074
  %1211 = vmatpush.bf16.msra.mxu0 %v1073
  %1212 = vmatmul.bf16.gmra.mxu0 %v685
  %v1213 = vpop.f32.mrf.mxu0
  %v1214 = vadd.f32 %v822, %v1213
  %v1215 = vpop.f32.mrf.mxu0
  %1216 = vdwg.mxu0
  %1217 = vmatpush.bf16.msra.mxu0 %v1088
  %1218 = vmatpush.bf16.msra.mxu0 %v1087
  %1219 = vmatpush.bf16.msra.mxu0 %v1086
  %1220 = vmatpush.bf16.msra.mxu0 %v1085
  %1221 = vmatpush.bf16.msra.mxu0 %v1084
  %1222 = vmatpush.bf16.msra.mxu0 %v1083
  %1223 = vmatpush.bf16.msra.mxu0 %v1082
  %1224 = vmatpush.bf16.msra.mxu0 %v1081
  %1225 = vmatmul.bf16.gmra.mxu0 %v686
  %v1226 = vpop.f32.mrf.mxu0
  %v1227 = vadd.f32 %v1214, %v1226
  %v1228 = vpop.f32.mrf.mxu0
  %1229 = vdwg.mxu0
  %1230 = vmatpush.bf16.msra.mxu0 %v1096
  %1231 = vmatpush.bf16.msra.mxu0 %v1095
  %1232 = vmatpush.bf16.msra.mxu0 %v1094
  %1233 = vmatpush.bf16.msra.mxu0 %v1093
  %1234 = vmatpush.bf16.msra.mxu0 %v1092
  %1235 = vmatpush.bf16.msra.mxu0 %v1091
  %1236 = vmatpush.bf16.msra.mxu0 %v1090
  %1237 = vmatpush.bf16.msra.mxu0 %v1089
  %1238 = vmatmul.bf16.gmra.mxu0 %v687
  %v1239 = vpop.f32.mrf.mxu0
  %v1240 = vadd.f32 %v1227, %v1239
  %v1241 = vpop.f32.mrf.mxu0
  %1242 = vdwg.mxu0
  %1243 = vmatpush.bf16.msra.mxu0 %v1104
  %1244 = vmatpush.bf16.msra.mxu0 %v1103
  %1245 = vmatpush.bf16.msra.mxu0 %v1102
  %1246 = vmatpush.bf16.msra.mxu0 %v1101
  %1247 = vmatpush.bf16.msra.mxu0 %v1100
  %1248 = vmatpush.bf16.msra.mxu0 %v1099
  %1249 = vmatpush.bf16.msra.mxu0 %v1098
  %1250 = vmatpush.bf16.msra.mxu0 %v1097
  %1251 = vmatmul.bf16.gmra.mxu0 %v688
  %v1252 = vpop.f32.mrf.mxu0
  %v1253 = vadd.f32 %v1240, %v1252
  %v1254 = vpop.f32.mrf.mxu0
  %1255 = vdwg.mxu0
  %1256 = vmatpush.bf16.msra.mxu0 %v1112
  %1257 = vmatpush.bf16.msra.mxu0 %v1111
  %1258 = vmatpush.bf16.msra.mxu0 %v1110
  %1259 = vmatpush.bf16.msra.mxu0 %v1109
  %1260 = vmatpush.bf16.msra.mxu0 %v1108
  %1261 = vmatpush.bf16.msra.mxu0 %v1107
  %1262 = vmatpush.bf16.msra.mxu0 %v1106
  %1263 = vmatpush.bf16.msra.mxu0 %v1105
  %1264 = vmatmul.bf16.gmra.mxu0 %v689
  %v1265 = vpop.f32.mrf.mxu0
  %v1266 = vadd.f32 %v1253, %v1265
  %v1267 = vpop.f32.mrf.mxu0
  %1268 = vdwg.mxu0
  %1269 = vmatpush.bf16.msra.mxu0 %v1120
  %1270 = vmatpush.bf16.msra.mxu0 %v1119
  %1271 = vmatpush.bf16.msra.mxu0 %v1118
  %1272 = vmatpush.bf16.msra.mxu0 %v1117
  %1273 = vmatpush.bf16.msra.mxu0 %v1116
  %1274 = vmatpush.bf16.msra.mxu0 %v1115
  %1275 = vmatpush.bf16.msra.mxu0 %v1114
  %1276 = vmatpush.bf16.msra.mxu0 %v1113
  %1277 = vmatmul.bf16.gmra.mxu0 %v690
  %v1278 = vpop.f32.mrf.mxu0
  %v1279 = vadd.f32 %v1266, %v1278
  %v1280 = vpop.f32.mrf.mxu0
  %1281 = vdwg.mxu0
  %1282 = vmatpush.bf16.msra.mxu0 %v1128
  %1283 = vmatpush.bf16.msra.mxu0 %v1127
  %1284 = vmatpush.bf16.msra.mxu0 %v1126
  %1285 = vmatpush.bf16.msra.mxu0 %v1125
  %1286 = vmatpush.bf16.msra.mxu0 %v1124
  %1287 = vmatpush.bf16.msra.mxu0 %v1123
  %1288 = vmatpush.bf16.msra.mxu0 %v1122
  %1289 = vmatpush.bf16.msra.mxu0 %v1121
  %1290 = vmatmul.bf16.gmra.mxu0 %v691
  %v1291 = vpop.f32.mrf.mxu0
  %v1292 = vadd.f32 %v1279, %v1291
  %v1293 = vpop.f32.mrf.mxu0
  %1294 = vdwg.mxu0
  %1295 = vmatpush.bf16.msra.mxu0 0
  %1296 = vmatpush.bf16.msra.mxu0 %v1202
  %1297 = vmatpush.bf16.msra.mxu0 %v1134
  %1298 = vmatpush.bf16.msra.mxu0 %v1133
  %1299 = vmatpush.bf16.msra.mxu0 %v1132
  %1300 = vmatpush.bf16.msra.mxu0 %v1131
  %1301 = vmatpush.bf16.msra.mxu0 %v1130
  %1302 = vmatpush.bf16.msra.mxu0 %v1129
  %1303 = vmatmul.bf16.gmra.mxu0 %v1199
  %v1304 = vpop.f32.mrf.mxu0
  %v1305 = vadd.f32 %v1292, %v1304
  %v1306 = vpop.f32.mrf.mxu0
  %1307 = vdwg.mxu0
  %v1308 = vmax.f32 %v1305, 0.0
  %v1309 = vrcp.pop %v684
  %v1310 = vmul.f32 %v1308, %v1309
  %v1311 = vld [vmem:[%s9] sm:$0x1]
  %v1312 = vld [vmem:[%s10] sm:$0x1]
  %vm1313 = vcmask 818176
  %v1314 = vsel %vm1313, %v1310, 0.0
  %v1315 = vrot.slane %v1314, 4
  %v1316 = vadd.f32 %v1314, %v1315
  %v1317 = vrot.slane %v1316, 2
  %v1318 = vadd.f32 %v1316, %v1317
  %v1319 = vrot.slane %v1318, 1
  %v1320 = vadd.f32 %v1318, %v1319
  %v1321 = vmul.f32 %v1320, %v64
  %v1322 = vmul.f32 %v1310, %v1310
  %v1323 = vsel %vm1313, %v1322, 0.0
  %v1324 = vrot.slane %v1323, 4
  %v1325 = vadd.f32 %v1323, %v1324
  %v1326 = vrot.slane %v1325, 2
  %v1327 = vadd.f32 %v1325, %v1326
  %v1328 = vrot.slane %v1327, 1
  %v1329 = vadd.f32 %v1327, %v1328
  %v1330 = vmul.f32 %v1329, %v64
  %v1331 = vmul.f32 %v1321, %v1321
  %v1332 = vsub.f32 %v1330, %v1331
  %v1333 = vmax.f32 %v1332, 0.0
  %v1334 = vadd.f32 %v1333, 1e-05
  %v1335 = vrsqrt.pop %v1334
  %v1336 = vmul.f32 %v1335, %v1334
  %v1337 = vmul.f32 %v1336, %v1335
  %v1338 = vmul.f32 0.5, %v1337
  %v1339 = vsub.f32 1.5, %v1338
  %v1340 = vmul.f32 %v1335, %v1339
  %vm1341 = vweird.f32 %v1334
  %vm1342 = vweird.f32 %v1335
  %vm1343 = vmor %vm1341, %vm1342
  %v1344 = vsel %vm1343, %v1335, %v1340
  %v1345 = vmul.f32 %v1344, %v1311
  %v1346 = vmul.f32 %v1321, %v1345
  %v1347 = vsub.f32 %v1312, %v1346
  %v1348 = vld [vmem:[%s11] sm:$0x1]
  %v1349 = vmul.f32 %v1345, %v1348
  %v1350 = vmul.f32 %v1347, %v1348
  %vm1351 = vcmask 811008
  %v1352 = vsel %vm1351, %v1350, 0.0
  %1353 = vadd.xlane.f32.xlu0 %v1352
  %v1354 = vpop.xlane.xlu0 %1353
  %v1355 = vld [vmem:[#allocation2] sm:$0x1]
  %v1356 = vadd.f32 %v1354, %v1355
  %v1357 = vperm.slane %v1349, 0
  %v1358 = vmul.f32 %v1310, %v1357
  %v1359 = vsel %vm1313, %v1358, 0.0
  %1360 = vadd.xlane.f32.xlu0 %v1359
  %v1361 = vpop.xlane.xlu0 %1360
  %v1362 = vperm.slane %v1356, 0
  %v1363 = vadd.f32 %v1361, %v1362
  %v1364 = vmul.f32 %v1363, 0.5
  %v1365 = vtanh.pop %v1364
  %v1366 = vmul.f32 %v1365, 0.5
  %v1367 = vadd.f32 %v1366, 0.5
  %vm1368 = vcmask 7168
  %1369 = vst.msk [vmem:[%s13] sm:$0xff] %vm1368, %v1367
  // Predicated region
  $region54: #{tpu_custom_call.1} parent=0 // pred_check
    _
  $region55: #{tpu_custom_call.1} parent=0 // pred_check_branch
    %1371 = sbr.rel (0) target = $region57
  $region56: #{tpu_custom_call.1} parent=0 // pred_region
    _
  $region57: #{tpu_custom_call.1} parent=0 // pred_fallthru
    _
  // Predicated region
  $region58: #{tpu_custom_call.1} parent=0 // pred_check
    _
  $region59: #{tpu_custom_call.1} parent=0 // pred_check_branch
    %1373 = sbr.rel (0) target = $region61
  $region60: #{tpu_custom_call.1} parent=0 // pred_region
    _
  $region61: #{tpu_custom_call.1} parent=0 // pred_fallthru
    _

</llo_original>
